<compile_context>
chip_gen: v7x
topology: tpu7x:2x2x1
jax: 0.10.0
libtpu: 0.0.40
codegen_flags: <defaults>
</compile_context>

<pallas_src>
import jax
import jax.numpy as jnp
from jax import lax
from jax.experimental import pallas as pl
from jax.experimental.pallas import tpu as pltpu


def _min_sublane(dtype) -> int:
    itemsize = jnp.dtype(dtype).itemsize
    if itemsize == 2:
        return 16
    if itemsize == 1:
        return 32
    return 8


def _pick_row_tile(n: int, dtype, max_tile: int = 256) -> int:
    """Row-tile choice: divides n, respects the dtype sublane minimum, prefers
    256-aligned tiles (fills the v6e/v7x 256x256 MXU), caps at max_tile to bound
    softmax intermediates, and leaves >= 2 tiles when legal (v7x megacore)."""
    m = _min_sublane(dtype)
    if n % m != 0:
        return n  # full-array block: always a legal BlockSpec
    if n >= 2 * m:
        cap = min(max_tile, (n // 2) // m * m)
    else:
        cap = min(max_tile, n)
    cap = max(cap, m)
    for align in (256, 128, m):
        if align > cap:
            continue
        t = cap // align * align
        while t >= align:
            if n % t == 0:
                return t
            t -= align
    return n


def _attention_kernel(q_ref, wqt_ref, wkt_ref, h_ref, o_ref, k_ref):
    # k_ref is persistent VMEM scratch holding the projected keys in f32.
    # Recompute it at each core's first inner step (program_id(1) == 0); the
    # outer ("parallel") axis may be sharded across TensorCores, so gating on
    # the inner index keeps this correct on megacore parts.
    @pl.when(pl.program_id(1) == 0)
    def _():
        k_ref[...] = jnp.dot(                 # (N, E) = history @ W_k^T
            h_ref[...], wkt_ref[...],
            preferred_element_type=jnp.float32)

    q = jnp.dot(                              # (tb, E) = query_tile @ W_q^T
        q_ref[...], wqt_ref[...],
        preferred_element_type=jnp.float32)
    scores = lax.dot_general(                 # (tb, N) = q @ k.T
        q, k_ref[...],
        dimension_numbers=(((1,), (1,)), ((), ())),
        preferred_element_type=jnp.float32)

    # Numerically stable softmax over the history axis (torch dim=1).
    m = jnp.max(scores, axis=-1, keepdims=True)
    e = jnp.exp(scores - m)
    denom = jnp.sum(e, axis=-1, keepdims=True)
    w = e * pl.reciprocal(denom, approx=True)

    o_ref[...] = jnp.dot(                     # (tb, E) = weights @ history
        w.astype(h_ref.dtype), h_ref[...],
        preferred_element_type=jnp.float32,
    ).astype(o_ref.dtype)


def simple_attention_forward(query: jax.Array, history: jax.Array,
                             w_q: jax.Array, w_k: jax.Array) -> jax.Array:
    """query: (B, E); history: (N, E); w_q, w_k: (E, E) in torch Linear layout."""
    B, E = query.shape
    N, E2 = history.shape
    assert E == E2, "embed_dim mismatch between query and history"
    assert w_q.shape == (E, E) and w_k.shape == (E, E), "weights must be (E, E)"

    # One-time transposes outside the kernel (cheap XLA op) so the in-kernel
    # projections contract ((1,),(0,)) and never materialize a transpose.
    w_q_t = w_q.T
    w_k_t = w_k.T

    b_tile = _pick_row_tile(B, query.dtype)
    num_b_tiles = max(B // b_tile, 1)
    n_outer = 2 if (num_b_tiles >= 2 and num_b_tiles % 2 == 0) else 1
    n_inner = num_b_tiles // n_outer

    # VMEM budget from the actual working set (query/out tiles double-buffered;
    # weights/history resident single-buffered; K scratch; softmax headroom).
    itemsize = jnp.dtype(query.dtype).itemsize
    working_set = (
        2 * b_tile * E * itemsize      # query tile (2-deep pipeline)
        + 2 * b_tile * E * itemsize    # output tile (2-deep pipeline)
        + 2 * E * E * itemsize         # W_q^T + W_k^T (resident)
        + N * E * itemsize             # history (resident)
        + N * E * 4                    # K scratch (f32)
        + 3 * b_tile * N * 4           # scores / exp intermediates
    )
    vmem_limit = int(min(max(2 * working_set, 32 << 20), 64 << 20))

    out = pl.pallas_call(
        _attention_kernel,
        out_shape=jax.ShapeDtypeStruct((B, E), query.dtype),
        grid_spec=pltpu.PrefetchScalarGridSpec(
            num_scalar_prefetch=0,
            grid=(n_outer, n_inner),
            in_specs=[
                # Query tile: pipelined over both grid axes.
                pl.BlockSpec((b_tile, E), lambda o, i: (o * n_inner + i, 0)),
                # Constant operands: fully VMEM-resident, single-buffered.
                pl.BlockSpec(memory_space=pltpu.MemorySpace.VMEM),  # W_q^T
                pl.BlockSpec(memory_space=pltpu.MemorySpace.VMEM),  # W_k^T
                pl.BlockSpec(memory_space=pltpu.MemorySpace.VMEM),  # history
            ],
            out_specs=pl.BlockSpec((b_tile, E), lambda o, i: (o * n_inner + i, 0)),
            scratch_shapes=[pltpu.VMEM((N, E), jnp.float32)],  # projected K
        ),
        compiler_params=pltpu.CompilerParams(
            dimension_semantics=("parallel", "arbitrary"),
            vmem_limit_bytes=vmem_limit,
        ),
    )(query, w_q_t, w_k_t, history)
    return out


if __name__ == "__main__":
    key = jax.random.PRNGKey(0)
    kq, kh, kwq, kwk = jax.random.split(key, 4)

    EMBED_DIM = 128     # lane-aligned embed dim
    NUM_QUERIES = 16    # small query batch (2 row tiles -> 2-step parallel axis)
    NUM_HISTORY = 128   # small history length

    query = jax.random.normal(kq, (NUM_QUERIES, EMBED_DIM), dtype=jnp.float32)
    history = jax.random.normal(kh, (NUM_HISTORY, EMBED_DIM), dtype=jnp.float32)
    # nn.Linear(E, E, bias=False).weight has shape (out_features, in_features).
    w_q = 0.02 * jax.random.normal(kwq, (EMBED_DIM, EMBED_DIM), dtype=jnp.float32)
    w_k = 0.02 * jax.random.normal(kwk, (EMBED_DIM, EMBED_DIM), dtype=jnp.float32)

    out = simple_attention_forward(query, history, w_q, w_k)
    out = jax.block_until_ready(out)

    # Pure-JAX reference of the PyTorch forward.
    q_ref = query @ w_q.T
    k_ref = history @ w_k.T
    scores_ref = q_ref @ k_ref.T
    weights_ref = jax.nn.softmax(scores_ref, axis=1)
    expected = weights_ref @ history

    assert out.shape == expected.shape
    assert jnp.allclose(out, expected, atol=2e-3, rtol=2e-3), "mismatch vs reference"
    print("KERNEL_OK")
</pallas_src>

<mosaic_0001>
module attributes {stable_mosaic.version = 11 : i64} {
  func.func @_attention_kernel(%arg0: i32, %arg1: i32, %arg2: memref<8x128xf32, #tpu.memory_space<vmem>>, %arg3: memref<128x128xf32, #tpu.memory_space<vmem>>, %arg4: memref<128x128xf32, #tpu.memory_space<vmem>>, %arg5: memref<128x128xf32, #tpu.memory_space<vmem>>, %arg6: memref<8x128xf32, #tpu.memory_space<vmem>>, %arg7: memref<128x128xf32, #tpu.memory_space<vmem>>) attributes {dimension_semantics = [#tpu.dimension_semantics<parallel>, #tpu.dimension_semantics<arbitrary>], iteration_bounds = array<i64: 2, 1>, scalar_prefetch = 0 : i64, scratch_operands = 1 : i64, tpu.core_type = #tpu.core_type<tc>, window_params = [{transform_indices = @transform_0, window_bounds = array<i64: 8, 128>}, {pipeline_mode = #tpu.pipeline_mode<synchronous>, transform_indices = @transform_1, window_bounds = array<i64: 128, 128>}, {pipeline_mode = #tpu.pipeline_mode<synchronous>, transform_indices = @transform_2, window_bounds = array<i64: 128, 128>}, {pipeline_mode = #tpu.pipeline_mode<synchronous>, transform_indices = @transform_3, window_bounds = array<i64: 128, 128>}, {transform_indices = @transform_4, window_bounds = array<i64: 8, 128>}]} {
    %c0_i32 = arith.constant 0 : i32
    %0 = arith.cmpi eq, %arg1, %c0_i32 : i32
    %1 = arith.extui %0 : i1 to i32
    %c0_i32_0 = arith.constant 0 : i32
    %2 = arith.cmpi ne, %1, %c0_i32_0 : i32
    scf.if %2 {
      %c0_14 = arith.constant 0 : index
      %c0_15 = arith.constant 0 : index
      %21 = vector.load %arg5[%c0_14, %c0_15] : memref<128x128xf32, #tpu.memory_space<vmem>>, vector<128x128xf32>
      %c0_16 = arith.constant 0 : index
      %c0_17 = arith.constant 0 : index
      %22 = vector.load %arg4[%c0_16, %c0_17] : memref<128x128xf32, #tpu.memory_space<vmem>>, vector<128x128xf32>
      %cst_18 = arith.constant dense<0.000000e+00> : vector<128x128xf32>
      %23 = tpu.matmul %21, %22, %cst_18 {dimension_numbers = #tpu.dot_dimension_numbers<[1], [0], [0], [1], [0, 0, 1, 1], [], []>} : vector<128x128xf32>, vector<128x128xf32>, vector<128x128xf32> -> vector<128x128xf32>
      %c0_19 = arith.constant 0 : index
      %c0_20 = arith.constant 0 : index
      %24 = vector.load %arg7[%c0_19, %c0_20] : memref<128x128xf32, #tpu.memory_space<vmem>>, vector<128x128xf32>
      tpu.vector_store %arg7[%c0_19, %c0_20], %23 {strides = array<i32>} : memref<128x128xf32, #tpu.memory_space<vmem>>, vector<128x128xf32>,
    } else {
    }
    %c0 = arith.constant 0 : index
    %c0_1 = arith.constant 0 : index
    %3 = vector.load %arg2[%c0, %c0_1] : memref<8x128xf32, #tpu.memory_space<vmem>>, vector<8x128xf32>
    %c0_2 = arith.constant 0 : index
    %c0_3 = arith.constant 0 : index
    %4 = vector.load %arg3[%c0_2, %c0_3] : memref<128x128xf32, #tpu.memory_space<vmem>>, vector<128x128xf32>
    %cst = arith.constant dense<0.000000e+00> : vector<8x128xf32>
    %5 = tpu.matmul %3, %4, %cst {dimension_numbers = #tpu.dot_dimension_numbers<[1], [0], [0], [1], [0, 0, 1, 1], [], []>} : vector<8x128xf32>, vector<128x128xf32>, vector<8x128xf32> -> vector<8x128xf32>
    %c0_4 = arith.constant 0 : index
    %c0_5 = arith.constant 0 : index
    %6 = vector.load %arg7[%c0_4, %c0_5] : memref<128x128xf32, #tpu.memory_space<vmem>>, vector<128x128xf32>
    %cst_6 = arith.constant dense<0.000000e+00> : vector<8x128xf32>
    %7 = tpu.matmul %5, %6, %cst_6 {dimension_numbers = #tpu.dot_dimension_numbers<[1], [1], [0], [0], [0, 0, 1, 0], [], []>} : vector<8x128xf32>, vector<128x128xf32>, vector<8x128xf32> -> vector<8x128xf32>
    %cst_7 = arith.constant dense<0xFF800000> : vector<8xf32>
    %8 = vector.multi_reduction <maximumf>, %7, %cst_7 [1] : vector<8x128xf32> to vector<8xf32>
    %9 = vector.shape_cast %8 : vector<8xf32> to vector<8x1xf32>
    %10 = vector.broadcast %9 : vector<8x1xf32> to vector<8x128xf32>
    %11 = arith.subf %7, %10 : vector<8x128xf32>
    %12 = math.exp %11 : vector<8x128xf32>
    %cst_8 = arith.constant dense<0.000000e+00> : vector<8xf32>
    %13 = vector.multi_reduction <add>, %12, %cst_8 [1] : vector<8x128xf32> to vector<8xf32>
    %14 = vector.shape_cast %13 : vector<8xf32> to vector<8x1xf32>
    %15 = tpu.reciprocal %14 {approx = true} : vector<8x1xf32> -> vector<8x1xf32>
    %16 = vector.broadcast %15 : vector<8x1xf32> to vector<8x128xf32>
    %17 = arith.mulf %12, %16 : vector<8x128xf32>
    %c0_9 = arith.constant 0 : index
    %c0_10 = arith.constant 0 : index
    %18 = vector.load %arg5[%c0_9, %c0_10] : memref<128x128xf32, #tpu.memory_space<vmem>>, vector<128x128xf32>
    %cst_11 = arith.constant dense<0.000000e+00> : vector<8x128xf32>
    %19 = tpu.matmul %17, %18, %cst_11 {dimension_numbers = #tpu.dot_dimension_numbers<[1], [0], [0], [1], [0, 0, 1, 1], [], []>} : vector<8x128xf32>, vector<128x128xf32>, vector<8x128xf32> -> vector<8x128xf32>
    %c0_12 = arith.constant 0 : index
    %c0_13 = arith.constant 0 : index
    %20 = vector.load %arg6[%c0_12, %c0_13] : memref<8x128xf32, #tpu.memory_space<vmem>>, vector<8x128xf32>
    tpu.vector_store %arg6[%c0_12, %c0_13], %19 {strides = array<i32>} : memref<8x128xf32, #tpu.memory_space<vmem>>, vector<8x128xf32>,
    return
  }
  func.func @transform_0(%arg0: i32, %arg1: i32) -> (i32, i32) {
    %c1_i32 = arith.constant 1 : i32
    %0 = arith.muli %arg0, %c1_i32 : i32
    %1 = arith.addi %0, %arg1 : i32
    %c0_i32 = arith.constant 0 : i32
    %c0_i32_0 = arith.constant 0 : i32
    return %1, %c0_i32 : i32, i32
  }
  func.func @transform_1(%arg0: i32, %arg1: i32) -> (i32, i32) {
    %c0_i32 = arith.constant 0 : i32
    %c0_i32_0 = arith.constant 0 : i32
    %c0_i32_1 = arith.constant 0 : i32
    return %c0_i32, %c0_i32_0 : i32, i32
  }
  func.func @transform_2(%arg0: i32, %arg1: i32) -> (i32, i32) {
    %c0_i32 = arith.constant 0 : i32
    %c0_i32_0 = arith.constant 0 : i32
    %c0_i32_1 = arith.constant 0 : i32
    return %c0_i32, %c0_i32_0 : i32, i32
  }
  func.func @transform_3(%arg0: i32, %arg1: i32) -> (i32, i32) {
    %c0_i32 = arith.constant 0 : i32
    %c0_i32_0 = arith.constant 0 : i32
    %c0_i32_1 = arith.constant 0 : i32
    return %c0_i32, %c0_i32_0 : i32, i32
  }
  func.func @transform_4(%arg0: i32, %arg1: i32) -> (i32, i32) {
    %c1_i32 = arith.constant 1 : i32
    %0 = arith.muli %arg0, %c1_i32 : i32
    %1 = arith.addi %0, %arg1 : i32
    %c0_i32 = arith.constant 0 : i32
    %c0_i32_0 = arith.constant 0 : i32
    return %1, %c0_i32 : i32, i32
  }
}

</mosaic_0001>

<llo_original>
// kernel: tpu_custom_call.1
$region0: #{tpu_custom_call.1}
  #allocation0 [shape = 'u32[]', space=smem, size = 0x4, offset = 0x4, fixed_abs, tag = 'smem constant byte address 0x4 - core index']
  #allocation1 [shape = 'u32[144,128]{1,0:T(1,128)}', space=vmem, size = 0x12000, scoped, tag = 'internal scratch']
  #allocation2 [shape = 'f32[128,128]{1,0:T(8,128)}', space=vmem, size = 0x10000, scoped, tag = 'scratch operand']
  %s0 = inlined_call_operand.hbm [shape: f32[16,128], index: 0, kind: input, shape index: {}]
  %s1 = inlined_call_operand.hbm [shape: f32[128,128], index: 1, kind: input, shape index: {}]
  %s2 = inlined_call_operand.hbm [shape: f32[128,128], index: 2, kind: input, shape index: {}]
  %s3 = inlined_call_operand.hbm [shape: f32[128,128], index: 3, kind: input, shape index: {}]
  %s4 = inlined_call_operand.hbm [shape: f32[16,128], index: 4, kind: output, shape index: {}]
  %s5 = sld [smem:[#allocation0]]
  $region69: #{tpu_custom_call.1} parent=0
    _
  %s7 = ssub.s32 1, %s5
  %s8 = scalar_select 0, %s7, %s5
  $region1: #{tpu_custom_call.1} parent=0
    #allocation3 [shape = 'u8[8192]{0}', space=vmem, size = 0x2000, scoped, tag = 'input window, operand 0']
    #allocation4 [shape = 's32[2]{0}', space=sflag, size = 0x8, scoped, tag = 'scoped memory for tpu_custom_call.1']
    #allocation5 [shape = 's32[2]{0}', space=sflag, size = 0x8, scoped, tag = 'scoped memory for tpu_custom_call.1']
    #allocation6 [shape = 'u8[65536]{0}', space=vmem, size = 0x10000, scoped, tag = 'input window, operand 1, single buffered']
    #allocation7 [shape = 's32[1]{0}', space=sflag, size = 0x4, scoped, tag = 'scoped memory for tpu_custom_call.1']
    #allocation8 [shape = 'u8[65536]{0}', space=vmem, size = 0x10000, scoped, tag = 'input window, operand 2, single buffered']
    #allocation9 [shape = 'u8[65536]{0}', space=vmem, size = 0x10000, scoped, tag = 'input window, operand 3, single buffered']
    #allocation10 [shape = 's32[1]{0}', space=sflag, size = 0x4, scoped, tag = 'scoped memory for tpu_custom_call.1']
    #allocation11 [shape = 'u8[8192]{0}', space=vmem, size = 0x2000, scoped, tag = 'output window, operand 0']
    %9 = vsyncpa [#allocation4], 0
    %s10 = scalar_lea.sflag [#allocation4], 1
    %11 = vsyncpa %s10, 0
    %12 = vsyncpa [#allocation7], 0
    %13 = vsyncpa [#allocation10], 0
    %14 = vsyncpa [#allocation5], 0
    %s15 = scalar_lea.sflag [#allocation5], 1
    %16 = vsyncpa %s15, 0
    loop: start=0, step=1, limit=4
    $region2: #{tpu_custom_call.1} parent=1 // loop_pre_header
      _
    $region3: #{tpu_custom_call.1} parent=1 // loop_header
      %s18 = sphi 0, %s22
      %p19 = scmp.ge.s32.totalorder %s18, 4
      %s25 = sphi 0, %s37
      %s26 = sphi 0, %s33
      %s27 = sphi 0, %s25
      %s28 = sphi 0, %s26
      %s29 = sphi 0, %s27
      %s30 = sphi 0, %s28
      %s42 = sphi 0, %s44
      %s45 = sphi 0, %s42
      %s46 = sphi 0, %s45
      %s62 = sphi 0, %s46
      %s66 = sphi 0, %s66
      %s68 = sphi 0, %s66
      %s69 = sphi 0, %s68
      %s83 = sphi 0, %s69
      %s87 = sphi 0, %s87
      %s89 = sphi 0, %s87
      %s90 = sphi 0, %s89
      %s104 = sphi 0, %s90
      %s108 = sphi 0, %s108
      %s110 = sphi 0, %s108
      %s111 = sphi 0, %s110
      %s125 = sphi 0, %s111
      %s133 = sphi 0, %s135
      %s136 = sphi 0, %s133
      %s137 = sphi 0, %s136
      %s153 = sphi 0, %s137
    $region4: #{tpu_custom_call.1} parent=1 // loop_header_branch
      %21 = sbr.rel (%p19) target = $region8
    $region5: #{tpu_custom_call.1} parent=1 // loop_body
      %s23 = ssub.s32 %s18, 1
      %s24 = ssub.s32 %s18, 2
      %s31 = sadd.s32 1, %s26
      %p32 = scmp.ge.s32.totalorder %s31, 1
      %s33 = scalar_select %p32, 0, %s31
      %s34 = sadd.s32 1, %s25
      %s35 = scalar_select %p32, %s34, %s25
      %p36 = scmp.ge.s32.totalorder %s35, 2
      %s37 = scalar_select %p36, 0, %s35
      %s38 = sadd.s32 %s25, %s26
      %s39 = sadd.s32 %s37, %s33
      %s40 = ssub.s32 %s38, %s39
      %p41 = scmp.eq.s32.totalorder %s40, 0
      %s43 = sadd.s32 %s42, 1
      %s44 = scalar_select %p41, %s42, %s43
      %p47 = pneg %p41
      %p48 = scmp.eq.s32.totalorder %s18, 1
      %p49 = por %p47, %p48
      %p50 = scmp.ne.s32.totalorder %s42, %s45
      %p51 = scmp.eq.s32.totalorder %s18, 0
      %p52 = por %p50, %p51
      %p53 = scmp.ne.s32.totalorder %s42, %s45
      %p54 = scmp.eq.s32.totalorder %s23, 1
      %p55 = por %p53, %p54
      %p56 = scmp.ne.s32.totalorder %s45, %s46
      %p57 = scmp.eq.s32.totalorder %s23, 0
      %p58 = por %p56, %p57
      %p59 = scmp.ne.s32.totalorder %s45, %s46
      %p60 = scmp.eq.s32.totalorder %s24, 1
      %p61 = por %p59, %p60
      %p63 = scmp.ne.s32.totalorder %s46, %s62
      %p64 = scmp.eq.s32.totalorder %s24, 0
      %p65 = por %p63, %p64
      %s67 = sadd.s32 %s66, 1
      %p70 = scmp.eq.s32.totalorder %s18, 1
      %p71 = scmp.ne.s32.totalorder %s66, %s68
      %p72 = scmp.eq.s32.totalorder %s18, 0
      %p73 = por %p71, %p72
      %p74 = scmp.ne.s32.totalorder %s66, %s68
      %p75 = scmp.eq.s32.totalorder %s23, 1
      %p76 = por %p74, %p75
      %p77 = scmp.ne.s32.totalorder %s68, %s69
      %p78 = scmp.eq.s32.totalorder %s23, 0
      %p79 = por %p77, %p78
      %p80 = scmp.ne.s32.totalorder %s68, %s69
      %p81 = scmp.eq.s32.totalorder %s24, 1
      %p82 = por %p80, %p81
      %p84 = scmp.ne.s32.totalorder %s69, %s83
      %p85 = scmp.eq.s32.totalorder %s24, 0
      %p86 = por %p84, %p85
      %s88 = sadd.s32 %s87, 1
      %p91 = scmp.eq.s32.totalorder %s18, 1
      %p92 = scmp.ne.s32.totalorder %s87, %s89
      %p93 = scmp.eq.s32.totalorder %s18, 0
      %p94 = por %p92, %p93
      %p95 = scmp.ne.s32.totalorder %s87, %s89
      %p96 = scmp.eq.s32.totalorder %s23, 1
      %p97 = por %p95, %p96
      %p98 = scmp.ne.s32.totalorder %s89, %s90
      %p99 = scmp.eq.s32.totalorder %s23, 0
      %p100 = por %p98, %p99
      %p101 = scmp.ne.s32.totalorder %s89, %s90
      %p102 = scmp.eq.s32.totalorder %s24, 1
      %p103 = por %p101, %p102
      %p105 = scmp.ne.s32.totalorder %s90, %s104
      %p106 = scmp.eq.s32.totalorder %s24, 0
      %p107 = por %p105, %p106
      %s109 = sadd.s32 %s108, 1
      %p112 = scmp.eq.s32.totalorder %s18, 1
      %p113 = scmp.ne.s32.totalorder %s108, %s110
      %p114 = scmp.eq.s32.totalorder %s18, 0
      %p115 = por %p113, %p114
      %p116 = scmp.ne.s32.totalorder %s108, %s110
      %p117 = scmp.eq.s32.totalorder %s23, 1
      %p118 = por %p116, %p117
      %p119 = scmp.ne.s32.totalorder %s110, %s111
      %p120 = scmp.eq.s32.totalorder %s23, 0
      %p121 = por %p119, %p120
      %p122 = scmp.ne.s32.totalorder %s110, %s111
      %p123 = scmp.eq.s32.totalorder %s24, 1
      %p124 = por %p122, %p123
      %p126 = scmp.ne.s32.totalorder %s111, %s125
      %p127 = scmp.eq.s32.totalorder %s24, 0
      %p128 = por %p126, %p127
      %s129 = sadd.s32 %s25, %s26
      %s130 = sadd.s32 %s37, %s33
      %s131 = ssub.s32 %s129, %s130
      %p132 = scmp.eq.s32.totalorder %s131, 0
      %s134 = sadd.s32 %s133, 1
      %s135 = scalar_select %p132, %s133, %s134
      %p138 = pneg %p132
      %p139 = scmp.eq.s32.totalorder %s18, 1
      %p140 = por %p138, %p139
      %p141 = scmp.ne.s32.totalorder %s133, %s136
      %p142 = scmp.eq.s32.totalorder %s18, 0
      %p143 = por %p141, %p142
      %p144 = scmp.ne.s32.totalorder %s133, %s136
      %p145 = scmp.eq.s32.totalorder %s23, 1
      %p146 = por %p144, %p145
      %p147 = scmp.ne.s32.totalorder %s136, %s137
      %p148 = scmp.eq.s32.totalorder %s23, 0
      %p149 = por %p147, %p148
      %p150 = scmp.ne.s32.totalorder %s136, %s137
      %p151 = scmp.eq.s32.totalorder %s24, 1
      %p152 = por %p150, %p151
      %p154 = scmp.ne.s32.totalorder %s137, %s153
      %p155 = scmp.eq.s32.totalorder %s24, 0
      %p156 = por %p154, %p155
      %p157 = scmp.le.s32.totalorder 1, %s18
      %p158 = scmp.lt.s32.totalorder %s18, 3
      %p159 = pnand %p157, %p158
      %p160 = pneg %p159
      // Predicated region
      $region9: #{tpu_custom_call.1} parent=5 // pred_check
        _
      $region10: #{tpu_custom_call.1} parent=5 // pred_check_branch
        %162 = sbr.rel (%p159) target = $region12
      $region11: #{tpu_custom_call.1} parent=5 // pred_region
        %s163 = ssub.s32 %s18, 1
        // Predicated region
        $region13: #{tpu_custom_call.1} parent=11 // pred_check
          %p164 = pneg %p79
        $region14: #{tpu_custom_call.1} parent=11 // pred_check_branch
          %166 = sbr.rel (%p164) target = $region16
        $region15: #{tpu_custom_call.1} parent=11 // pred_region
          %s168 = ssub.s32 2048, 2048
          %169 = vsyncadd [#allocation7], %s168
          %s170 = sshll.u32 [#allocation6], 4
          %s171 = int_to_ptr.vmem [resolvable:$true] %s170
          %176 = dma.hbm_to_vmem [thread:$0]  %s1, 2048, %s171, [#allocation7], 128, 128, 8
        $region16: #{tpu_custom_call.1} parent=11 // pred_fallthru
          _
        // Predicated region
        $region17: #{tpu_custom_call.1} parent=11 // pred_check
          %p177 = pneg %p100
        $region18: #{tpu_custom_call.1} parent=11 // pred_check_branch
          %179 = sbr.rel (%p177) target = $region20
        $region19: #{tpu_custom_call.1} parent=11 // pred_region
          %s181 = ssub.s32 2048, 2048
          %182 = vsyncadd [#allocation7], %s181
          %s183 = sshll.u32 [#allocation8], 4
          %s184 = int_to_ptr.vmem [resolvable:$true] %s183
          %189 = dma.hbm_to_vmem [thread:$0]  %s2, 2048, %s184, [#allocation7], 128, 128, 8
        $region20: #{tpu_custom_call.1} parent=11 // pred_fallthru
          _
        // Predicated region
        $region21: #{tpu_custom_call.1} parent=11 // pred_check
          %p190 = pneg %p121
        $region22: #{tpu_custom_call.1} parent=11 // pred_check_branch
          %192 = sbr.rel (%p190) target = $region24
        $region23: #{tpu_custom_call.1} parent=11 // pred_region
          %s194 = ssub.s32 2048, 2048
          %195 = vsyncadd [#allocation10], %s194
          %s196 = sshll.u32 [#allocation9], 4
          %s197 = int_to_ptr.vmem [resolvable:$true] %s196
          %202 = dma.hbm_to_vmem [thread:$0]  %s3, 2048, %s197, [#allocation10], 128, 128, 8
        $region24: #{tpu_custom_call.1} parent=11 // pred_fallthru
          _
      $region12: #{tpu_custom_call.1} parent=5 // pred_fallthru
        _
      %p203 = scmp.lt.s32.totalorder %s18, 2
      // Predicated region
      $region25: #{tpu_custom_call.1} parent=5 // pred_check
        %p204 = pneg %p203
      $region26: #{tpu_custom_call.1} parent=5 // pred_check_branch
        %206 = sbr.rel (%p204) target = $region28
      $region27: #{tpu_custom_call.1} parent=5 // pred_region
        // Predicated region
        $region29: #{tpu_custom_call.1} parent=27 // pred_check
          %p207 = pneg %p52
        $region30: #{tpu_custom_call.1} parent=27 // pred_check_branch
          %209 = sbr.rel (%p207) target = $region32
        $region31: #{tpu_custom_call.1} parent=27 // pred_region
          %s210 = sand.u32 %s42, 1
          %s211 = scalar_lea.sflag [#allocation4], %s210
          %s212 = sand.u32 %s42, 1
          %s213 = smul.addr %s212, 8
          %s214 = scalar_lea.vmem [#allocation3], %s213
          %s215 = sadd.s32 %s25, %s26
          %s217 = ssub.s32 128, 128
          %218 = vsyncadd %s211, %s217
          %s219 = smul.addr %s215, 128
          %s220 = scalar_lea.hbm %s0, %s219
          %s222 = sshll.u32 %s214, 4
          %s223 = int_to_ptr.vmem [resolvable:$true] %s222
          %225 = dma.hbm_to_vmem [thread:$0]  %s220, 128, %s223, %s211
        $region32: #{tpu_custom_call.1} parent=27 // pred_fallthru
          _
      $region28: #{tpu_custom_call.1} parent=5 // pred_fallthru
        _
      %p226 = scmp.le.s32.totalorder 1, %s18
      %p227 = scmp.lt.s32.totalorder %s18, 3
      %p228 = pnand %p226, %p227
      %p229 = pneg %p228
      // Predicated region
      $region33: #{tpu_custom_call.1} parent=5 // pred_check
        _
      $region34: #{tpu_custom_call.1} parent=5 // pred_check_branch
        %231 = sbr.rel (%p228) target = $region36
      $region35: #{tpu_custom_call.1} parent=5 // pred_region
        %s232 = ssub.s32 %s18, 1
        %s233 = sand.u32 %s45, 1
        %s234 = scalar_lea.sflag [#allocation4], %s233
        %s235 = sand.u32 %s45, 1
        %s236 = smul.addr %s235, 8
        %s237 = scalar_lea.vmem [#allocation3], %s236
        // Predicated region
        $region37: #{tpu_custom_call.1} parent=35 // pred_check
          %p238 = pneg %p58
        $region38: #{tpu_custom_call.1} parent=35 // pred_check_branch
          %240 = sbr.rel (%p238) target = $region40
        $region39: #{tpu_custom_call.1} parent=35 // pred_region
          %241 = dma.done %s234, 128
        $region40: #{tpu_custom_call.1} parent=35 // pred_fallthru
          _
        // Predicated region
        $region41: #{tpu_custom_call.1} parent=35 // pred_check
          %p242 = pneg %p79
        $region42: #{tpu_custom_call.1} parent=35 // pred_check_branch
          %244 = sbr.rel (%p242) target = $region44
        $region43: #{tpu_custom_call.1} parent=35 // pred_region
          %245 = dma.done [#allocation7], 2048
        $region44: #{tpu_custom_call.1} parent=35 // pred_fallthru
          _
        // Predicated region
        $region45: #{tpu_custom_call.1} parent=35 // pred_check
          %p246 = pneg %p100
        $region46: #{tpu_custom_call.1} parent=35 // pred_check_branch
          %248 = sbr.rel (%p246) target = $region48
        $region47: #{tpu_custom_call.1} parent=35 // pred_region
          %249 = dma.done [#allocation7], 2048
        $region48: #{tpu_custom_call.1} parent=35 // pred_fallthru
          _
        // Predicated region
        $region49: #{tpu_custom_call.1} parent=35 // pred_check
          %p250 = pneg %p121
        $region50: #{tpu_custom_call.1} parent=35 // pred_check_branch
          %252 = sbr.rel (%p250) target = $region52
        $region51: #{tpu_custom_call.1} parent=35 // pred_region
          %253 = dma.done [#allocation10], 2048
        $region52: #{tpu_custom_call.1} parent=35 // pred_fallthru
          _
        %s254 = sand.u32 %s45, 1
        %s255 = scalar_lea.sflag [#allocation4], %s254
        %s256 = sand.u32 %s45, 1
        %s257 = smul.addr %s256, 8
        %s258 = scalar_lea.vmem [#allocation3], %s257
        %p259 = pneg %p58
        %p260 = pneg %p55
        %p261 = pneg %p79
        %p262 = pneg %p76
        %p263 = pneg %p100
        %p264 = pneg %p97
        %p265 = pneg %p121
        %p266 = pneg %p118
        %p267 = pneg %p149
        %p268 = pneg %p146
        %s269 = sand.u32 %s136, 1
        %s270 = scalar_lea.sflag [#allocation5], %s269
        %s271 = sand.u32 %s136, 1
        %s272 = smul.addr %s271, 8
        %s273 = scalar_lea.vmem [#allocation11], %s272
        %s274 = sadd.s32 %s27, %s28
        %s275 = sadd.s32 %s27, %s28
        %p276 = scmp.eq.s32.totalorder %s28, 0
        // Predicated region
        $region53: #{tpu_custom_call.1} parent=35 // pred_check
          %p277 = pneg %p276
        $region54: #{tpu_custom_call.1} parent=35 // pred_check_branch
          %279 = sbr.rel (%p277) target = $region56
        $region55: #{tpu_custom_call.1} parent=35 // pred_region
          %v280 = vld [vmem:[#allocation9] sm:$0xff]
          %v281 = vld [vmem:[#allocation9 + $0x8] sm:$0xff]
          %v282 = vld [vmem:[#allocation9 + $0x10] sm:$0xff]
          %v283 = vld [vmem:[#allocation9 + $0x18] sm:$0xff]
          %v284 = vld [vmem:[#allocation9 + $0x20] sm:$0xff]
          %v285 = vld [vmem:[#allocation9 + $0x28] sm:$0xff]
          %v286 = vld [vmem:[#allocation9 + $0x30] sm:$0xff]
          %v287 = vld [vmem:[#allocation9 + $0x38] sm:$0xff]
          %v288 = vld [vmem:[#allocation9 + $0x40] sm:$0xff]
          %v289 = vld [vmem:[#allocation9 + $0x48] sm:$0xff]
          %v290 = vld [vmem:[#allocation9 + $0x50] sm:$0xff]
          %v291 = vld [vmem:[#allocation9 + $0x58] sm:$0xff]
          %v292 = vld [vmem:[#allocation9 + $0x60] sm:$0xff]
          %v293 = vld [vmem:[#allocation9 + $0x68] sm:$0xff]
          %v294 = vld [vmem:[#allocation9 + $0x70] sm:$0xff]
          %v295 = vld [vmem:[#allocation9 + $0x78] sm:$0xff]
          %v296 = vld [vmem:[#allocation8] sm:$0xff]
          %v297 = vld [vmem:[#allocation8 + $0x8] sm:$0xff]
          %v298 = vld [vmem:[#allocation8 + $0x10] sm:$0xff]
          %v299 = vld [vmem:[#allocation8 + $0x18] sm:$0xff]
          %v300 = vld [vmem:[#allocation8 + $0x20] sm:$0xff]
          %v301 = vld [vmem:[#allocation8 + $0x28] sm:$0xff]
          %v302 = vld [vmem:[#allocation8 + $0x30] sm:$0xff]
          %v303 = vld [vmem:[#allocation8 + $0x38] sm:$0xff]
          %v304 = vld [vmem:[#allocation8 + $0x40] sm:$0xff]
          %v305 = vld [vmem:[#allocation8 + $0x48] sm:$0xff]
          %v306 = vld [vmem:[#allocation8 + $0x50] sm:$0xff]
          %v307 = vld [vmem:[#allocation8 + $0x58] sm:$0xff]
          %v308 = vld [vmem:[#allocation8 + $0x60] sm:$0xff]
          %v309 = vld [vmem:[#allocation8 + $0x68] sm:$0xff]
          %v310 = vld [vmem:[#allocation8 + $0x70] sm:$0xff]
          %v311 = vld [vmem:[#allocation8 + $0x78] sm:$0xff]
          %312 = vmatprep.subr.mxu0 0.0
          %313 = vmatpush1.msra.mxu0 %v296
          %314 = vmatprep.subr.mxu0 0.0
          %315 = vmatpush1.msra.mxu0 %v297
          %316 = vmatprep.subr.mxu0 0.0
          %317 = vmatpush1.msra.mxu0 %v298
          %318 = vmatprep.subr.mxu0 0.0
          %319 = vmatpush1.msra.mxu0 %v299
          %320 = vmatprep.subr.mxu0 0.0
          %321 = vmatpush1.msra.mxu0 %v300
          %322 = vmatprep.subr.mxu0 0.0
          %323 = vmatpush1.msra.mxu0 %v301
          %324 = vmatprep.subr.mxu0 0.0
          %325 = vmatpush1.msra.mxu0 %v302
          %326 = vmatprep.subr.mxu0 0.0
          %327 = vmatpush1.msra.mxu0 %v303
          %328 = vmatprep.subr.mxu0 0.0
          %329 = vmatpush1.msra.mxu0 %v304
          %330 = vmatprep.subr.mxu0 0.0
          %331 = vmatpush1.msra.mxu0 %v305
          %332 = vmatprep.subr.mxu0 0.0
          %333 = vmatpush1.msra.mxu0 %v306
          %334 = vmatprep.subr.mxu0 0.0
          %335 = vmatpush1.msra.mxu0 %v307
          %336 = vmatprep.subr.mxu0 0.0
          %337 = vmatpush1.msra.mxu0 %v308
          %338 = vmatprep.subr.mxu0 0.0
          %339 = vmatpush1.msra.mxu0 %v309
          %340 = vmatprep.subr.mxu0 0.0
          %341 = vmatpush1.msra.mxu0 %v310
          %342 = vmatprep.subr.mxu0 0.0
          %343 = vmatpush1.msra.mxu0 %v311
          %344 = vmatprep.subr.mxu0 0.0
          %345 = vmatpush1.msra.mxu0 0.0
          %346 = vmatprep.subr.mxu0 0.0
          %347 = vmatpush1.msra.mxu0 0.0
          %348 = vmatprep.subr.mxu0 0.0
          %349 = vmatpush1.msra.mxu0 0.0
          %350 = vmatprep.subr.mxu0 0.0
          %351 = vmatpush1.msra.mxu0 0.0
          %352 = vmatprep.subr.mxu0 0.0
          %353 = vmatpush1.msra.mxu0 0.0
          %354 = vmatprep.subr.mxu0 0.0
          %355 = vmatpush1.msra.mxu0 0.0
          %356 = vmatprep.subr.mxu0 0.0
          %357 = vmatpush1.msra.mxu0 0.0
          %358 = vmatprep.subr.mxu0 0.0
          %359 = vmatpush1.msra.mxu0 0.0
          %360 = vmatprep.subr.mxu0 0.0
          %361 = vmatpush1.msra.mxu0 0.0
          %362 = vmatprep.subr.mxu0 0.0
          %363 = vmatpush1.msra.mxu0 0.0
          %364 = vmatprep.subr.mxu0 0.0
          %365 = vmatpush1.msra.mxu0 0.0
          %366 = vmatprep.subr.mxu0 0.0
          %367 = vmatpush1.msra.mxu0 0.0
          %368 = vmatprep.subr.mxu0 0.0
          %369 = vmatpush1.msra.mxu0 0.0
          %370 = vmatprep.subr.mxu0 0.0
          %371 = vmatpush1.msra.mxu0 0.0
          %372 = vmatprep.subr.mxu0 0.0
          %373 = vmatpush1.msra.mxu0 0.0
          %374 = vmatprep.subr.mxu0 0.0
          %375 = vmatpush1.msra.mxu0 0.0
          %376 = vmatprep.mubr.f32.mxu0 0.0
          %377 = vmatmul.mubr.f32.gmra.mrb[0].mxu0 %v280
          %v378 = vpop.f32.mrb[0].mxu0
          %v379 = vadd.f32 0.0, %v378
          %v380 = vpop.f32.mrb[0].mxu0
          %381 = vmatprep.mubr.f32.mxu0 0.0
          %382 = vmatmul.mubr.f32.gmra.mrb[0].mxu0 %v281
          %v383 = vpop.f32.mrb[0].mxu0
          %v384 = vadd.f32 0.0, %v383
          %v385 = vpop.f32.mrb[0].mxu0
          %386 = vmatprep.mubr.f32.mxu0 0.0
          %387 = vmatmul.mubr.f32.gmra.mrb[0].mxu0 %v282
          %v388 = vpop.f32.mrb[0].mxu0
          %v389 = vadd.f32 0.0, %v388
          %v390 = vpop.f32.mrb[0].mxu0
          %391 = vmatprep.mubr.f32.mxu0 0.0
          %392 = vmatmul.mubr.f32.gmra.mrb[0].mxu0 %v283
          %v393 = vpop.f32.mrb[0].mxu0
          %v394 = vadd.f32 0.0, %v393
          %v395 = vpop.f32.mrb[0].mxu0
          %396 = vmatprep.mubr.f32.mxu0 0.0
          %397 = vmatmul.mubr.f32.gmra.mrb[0].mxu0 %v284
          %v398 = vpop.f32.mrb[0].mxu0
          %v399 = vadd.f32 0.0, %v398
          %v400 = vpop.f32.mrb[0].mxu0
          %401 = vmatprep.mubr.f32.mxu0 0.0
          %402 = vmatmul.mubr.f32.gmra.mrb[0].mxu0 %v285
          %v403 = vpop.f32.mrb[0].mxu0
          %v404 = vadd.f32 0.0, %v403
          %v405 = vpop.f32.mrb[0].mxu0
          %406 = vmatprep.mubr.f32.mxu0 0.0
          %407 = vmatmul.mubr.f32.gmra.mrb[0].mxu0 %v286
          %v408 = vpop.f32.mrb[0].mxu0
          %v409 = vadd.f32 0.0, %v408
          %v410 = vpop.f32.mrb[0].mxu0
          %411 = vmatprep.mubr.f32.mxu0 0.0
          %412 = vmatmul.mubr.f32.gmra.mrb[0].mxu0 %v287
          %v413 = vpop.f32.mrb[0].mxu0
          %v414 = vadd.f32 0.0, %v413
          %v415 = vpop.f32.mrb[0].mxu0
          %416 = vmatprep.mubr.f32.mxu0 0.0
          %417 = vmatmul.mubr.f32.gmra.mrb[0].mxu0 %v288
          %v418 = vpop.f32.mrb[0].mxu0
          %v419 = vadd.f32 0.0, %v418
          %v420 = vpop.f32.mrb[0].mxu0
          %421 = vmatprep.mubr.f32.mxu0 0.0
          %422 = vmatmul.mubr.f32.gmra.mrb[0].mxu0 %v289
          %v423 = vpop.f32.mrb[0].mxu0
          %v424 = vadd.f32 0.0, %v423
          %v425 = vpop.f32.mrb[0].mxu0
          %426 = vmatprep.mubr.f32.mxu0 0.0
          %427 = vmatmul.mubr.f32.gmra.mrb[0].mxu0 %v290
          %v428 = vpop.f32.mrb[0].mxu0
          %v429 = vadd.f32 0.0, %v428
          %v430 = vpop.f32.mrb[0].mxu0
          %431 = vmatprep.mubr.f32.mxu0 0.0
          %432 = vmatmul.mubr.f32.gmra.mrb[0].mxu0 %v291
          %v433 = vpop.f32.mrb[0].mxu0
          %v434 = vadd.f32 0.0, %v433
          %v435 = vpop.f32.mrb[0].mxu0
          %436 = vmatprep.mubr.f32.mxu0 0.0
          %437 = vmatmul.mubr.f32.gmra.mrb[0].mxu0 %v292
          %v438 = vpop.f32.mrb[0].mxu0
          %v439 = vadd.f32 0.0, %v438
          %v440 = vpop.f32.mrb[0].mxu0
          %441 = vmatprep.mubr.f32.mxu0 0.0
          %442 = vmatmul.mubr.f32.gmra.mrb[0].mxu0 %v293
          %v443 = vpop.f32.mrb[0].mxu0
          %v444 = vadd.f32 0.0, %v443
          %v445 = vpop.f32.mrb[0].mxu0
          %446 = vmatprep.mubr.f32.mxu0 0.0
          %447 = vmatmul.mubr.f32.gmra.mrb[0].mxu0 %v294
          %v448 = vpop.f32.mrb[0].mxu0
          %v449 = vadd.f32 0.0, %v448
          %v450 = vpop.f32.mrb[0].mxu0
          %451 = vmatprep.mubr.f32.mxu0 0.0
          %452 = vmatmul.mubr.f32.gmra.mrb[0].mxu0 %v295
          %v453 = vpop.f32.mrb[0].mxu0
          %v454 = vadd.f32 0.0, %v453
          %v455 = vpop.f32.mrb[0].mxu0
          %456 = vdwg.mxu0
          %457 = vst [vmem:[#allocation2] sm:$0xff] %v379
          %458 = vst [vmem:[#allocation2 + $0x8] sm:$0xff] %v384
          %459 = vst [vmem:[#allocation2 + $0x10] sm:$0xff] %v389
          %460 = vst [vmem:[#allocation2 + $0x18] sm:$0xff] %v394
          %461 = vst [vmem:[#allocation2 + $0x20] sm:$0xff] %v399
          %462 = vst [vmem:[#allocation2 + $0x28] sm:$0xff] %v404
          %463 = vst [vmem:[#allocation2 + $0x30] sm:$0xff] %v409
          %464 = vst [vmem:[#allocation2 + $0x38] sm:$0xff] %v414
          %465 = vst [vmem:[#allocation2 + $0x40] sm:$0xff] %v419
          %466 = vst [vmem:[#allocation2 + $0x48] sm:$0xff] %v424
          %467 = vst [vmem:[#allocation2 + $0x50] sm:$0xff] %v429
          %468 = vst [vmem:[#allocation2 + $0x58] sm:$0xff] %v434
          %469 = vst [vmem:[#allocation2 + $0x60] sm:$0xff] %v439
          %470 = vst [vmem:[#allocation2 + $0x68] sm:$0xff] %v444
          %471 = vst [vmem:[#allocation2 + $0x70] sm:$0xff] %v449
          %472 = vst [vmem:[#allocation2 + $0x78] sm:$0xff] %v454
        $region56: #{tpu_custom_call.1} parent=35 // pred_fallthru
          _
        %v473 = vld [vmem:[%s237] sm:$0xff]
        %v474 = vld [vmem:[#allocation6] sm:$0xff]
        %v475 = vld [vmem:[#allocation6 + $0x8] sm:$0xff]
        %v476 = vld [vmem:[#allocation6 + $0x10] sm:$0xff]
        %v477 = vld [vmem:[#allocation6 + $0x18] sm:$0xff]
        %v478 = vld [vmem:[#allocation6 + $0x20] sm:$0xff]
        %v479 = vld [vmem:[#allocation6 + $0x28] sm:$0xff]
        %v480 = vld [vmem:[#allocation6 + $0x30] sm:$0xff]
        %v481 = vld [vmem:[#allocation6 + $0x38] sm:$0xff]
        %v482 = vld [vmem:[#allocation6 + $0x40] sm:$0xff]
        %v483 = vld [vmem:[#allocation6 + $0x48] sm:$0xff]
        %v484 = vld [vmem:[#allocation6 + $0x50] sm:$0xff]
        %v485 = vld [vmem:[#allocation6 + $0x58] sm:$0xff]
        %v486 = vld [vmem:[#allocation6 + $0x60] sm:$0xff]
        %v487 = vld [vmem:[#allocation6 + $0x68] sm:$0xff]
        %v488 = vld [vmem:[#allocation6 + $0x70] sm:$0xff]
        %v489 = vld [vmem:[#allocation6 + $0x78] sm:$0xff]
        %490 = vmatprep.subr.mxu0 0.0
        %491 = vmatpush1.msra.mxu0 %v474
        %492 = vmatprep.subr.mxu0 0.0
        %493 = vmatpush1.msra.mxu0 %v475
        %494 = vmatprep.subr.mxu0 0.0
        %495 = vmatpush1.msra.mxu0 %v476
        %496 = vmatprep.subr.mxu0 0.0
        %497 = vmatpush1.msra.mxu0 %v477
        %498 = vmatprep.subr.mxu0 0.0
        %499 = vmatpush1.msra.mxu0 %v478
        %500 = vmatprep.subr.mxu0 0.0
        %501 = vmatpush1.msra.mxu0 %v479
        %502 = vmatprep.subr.mxu0 0.0
        %503 = vmatpush1.msra.mxu0 %v480
        %504 = vmatprep.subr.mxu0 0.0
        %505 = vmatpush1.msra.mxu0 %v481
        %506 = vmatprep.subr.mxu0 0.0
        %507 = vmatpush1.msra.mxu0 %v482
        %508 = vmatprep.subr.mxu0 0.0
        %509 = vmatpush1.msra.mxu0 %v483
        %510 = vmatprep.subr.mxu0 0.0
        %511 = vmatpush1.msra.mxu0 %v484
        %512 = vmatprep.subr.mxu0 0.0
        %513 = vmatpush1.msra.mxu0 %v485
        %514 = vmatprep.subr.mxu0 0.0
        %515 = vmatpush1.msra.mxu0 %v486
        %516 = vmatprep.subr.mxu0 0.0
        %517 = vmatpush1.msra.mxu0 %v487
        %518 = vmatprep.subr.mxu0 0.0
        %519 = vmatpush1.msra.mxu0 %v488
        %520 = vmatprep.subr.mxu0 0.0
        %521 = vmatpush1.msra.mxu0 %v489
        %522 = vmatprep.subr.mxu0 0.0
        %523 = vmatpush1.msra.mxu0 0.0
        %524 = vmatprep.subr.mxu0 0.0
        %525 = vmatpush1.msra.mxu0 0.0
        %526 = vmatprep.subr.mxu0 0.0
        %527 = vmatpush1.msra.mxu0 0.0
        %528 = vmatprep.subr.mxu0 0.0
        %529 = vmatpush1.msra.mxu0 0.0
        %530 = vmatprep.subr.mxu0 0.0
        %531 = vmatpush1.msra.mxu0 0.0
        %532 = vmatprep.subr.mxu0 0.0
        %533 = vmatpush1.msra.mxu0 0.0
        %534 = vmatprep.subr.mxu0 0.0
        %535 = vmatpush1.msra.mxu0 0.0
        %536 = vmatprep.subr.mxu0 0.0
        %537 = vmatpush1.msra.mxu0 0.0
        %538 = vmatprep.subr.mxu0 0.0
        %539 = vmatpush1.msra.mxu0 0.0
        %540 = vmatprep.subr.mxu0 0.0
        %541 = vmatpush1.msra.mxu0 0.0
        %542 = vmatprep.subr.mxu0 0.0
        %543 = vmatpush1.msra.mxu0 0.0
        %544 = vmatprep.subr.mxu0 0.0
        %545 = vmatpush1.msra.mxu0 0.0
        %546 = vmatprep.subr.mxu0 0.0
        %547 = vmatpush1.msra.mxu0 0.0
        %548 = vmatprep.subr.mxu0 0.0
        %549 = vmatpush1.msra.mxu0 0.0
        %550 = vmatprep.subr.mxu0 0.0
        %551 = vmatpush1.msra.mxu0 0.0
        %552 = vmatprep.subr.mxu0 0.0
        %553 = vmatpush1.msra.mxu0 0.0
        %554 = vmatprep.mubr.f32.mxu0 0.0
        %555 = vmatmul.mubr.f32.gmra.mrb[0].mxu0 %v473
        %v556 = vpop.f32.mrb[0].mxu0
        %v557 = vadd.f32 0.0, %v556
        %v558 = vpop.f32.mrb[0].mxu0
        %559 = vdwg.mxu0
        %v560 = vld [vmem:[#allocation2] sm:$0xff]
        %v561 = vld [vmem:[#allocation2 + $0x8] sm:$0xff]
        %v562 = vld [vmem:[#allocation2 + $0x10] sm:$0xff]
        %v563 = vld [vmem:[#allocation2 + $0x18] sm:$0xff]
        %v564 = vld [vmem:[#allocation2 + $0x20] sm:$0xff]
        %v565 = vld [vmem:[#allocation2 + $0x28] sm:$0xff]
        %v566 = vld [vmem:[#allocation2 + $0x30] sm:$0xff]
        %v567 = vld [vmem:[#allocation2 + $0x38] sm:$0xff]
        %v568 = vld [vmem:[#allocation2 + $0x40] sm:$0xff]
        %v569 = vld [vmem:[#allocation2 + $0x48] sm:$0xff]
        %v570 = vld [vmem:[#allocation2 + $0x50] sm:$0xff]
        %v571 = vld [vmem:[#allocation2 + $0x58] sm:$0xff]
        %v572 = vld [vmem:[#allocation2 + $0x60] sm:$0xff]
        %v573 = vld [vmem:[#allocation2 + $0x68] sm:$0xff]
        %v574 = vld [vmem:[#allocation2 + $0x70] sm:$0xff]
        %v575 = vld [vmem:[#allocation2 + $0x78] sm:$0xff]
        %576 = vmatprep.subr.mxu0 0.0
        %577 = vmatpush1.xpose.msra.mxu0 %v560
        %578 = vmatprep.subr.mxu0 0.0
        %579 = vmatpush1.xpose.msra.mxu0 %v561
        %580 = vmatprep.subr.mxu0 0.0
        %581 = vmatpush1.xpose.msra.mxu0 %v562
        %582 = vmatprep.subr.mxu0 0.0
        %583 = vmatpush1.xpose.msra.mxu0 %v563
        %584 = vmatprep.subr.mxu0 0.0
        %585 = vmatpush1.xpose.msra.mxu0 %v564
        %586 = vmatprep.subr.mxu0 0.0
        %587 = vmatpush1.xpose.msra.mxu0 %v565
        %588 = vmatprep.subr.mxu0 0.0
        %589 = vmatpush1.xpose.msra.mxu0 %v566
        %590 = vmatprep.subr.mxu0 0.0
        %591 = vmatpush1.xpose.msra.mxu0 %v567
        %592 = vmatprep.subr.mxu0 0.0
        %593 = vmatpush1.xpose.msra.mxu0 %v568
        %594 = vmatprep.subr.mxu0 0.0
        %595 = vmatpush1.xpose.msra.mxu0 %v569
        %596 = vmatprep.subr.mxu0 0.0
        %597 = vmatpush1.xpose.msra.mxu0 %v570
        %598 = vmatprep.subr.mxu0 0.0
        %599 = vmatpush1.xpose.msra.mxu0 %v571
        %600 = vmatprep.subr.mxu0 0.0
        %601 = vmatpush1.xpose.msra.mxu0 %v572
        %602 = vmatprep.subr.mxu0 0.0
        %603 = vmatpush1.xpose.msra.mxu0 %v573
        %604 = vmatprep.subr.mxu0 0.0
        %605 = vmatpush1.xpose.msra.mxu0 %v574
        %606 = vmatprep.subr.mxu0 0.0
        %607 = vmatpush1.xpose.msra.mxu0 %v575
        %608 = vmatprep.subr.mxu0 0.0
        %609 = vmatpush1.xpose.msra.mxu0 0.0
        %610 = vmatprep.subr.mxu0 0.0
        %611 = vmatpush1.xpose.msra.mxu0 0.0
        %612 = vmatprep.subr.mxu0 0.0
        %613 = vmatpush1.xpose.msra.mxu0 0.0
        %614 = vmatprep.subr.mxu0 0.0
        %615 = vmatpush1.xpose.msra.mxu0 0.0
        %616 = vmatprep.subr.mxu0 0.0
        %617 = vmatpush1.xpose.msra.mxu0 0.0
        %618 = vmatprep.subr.mxu0 0.0
        %619 = vmatpush1.xpose.msra.mxu0 0.0
        %620 = vmatprep.subr.mxu0 0.0
        %621 = vmatpush1.xpose.msra.mxu0 0.0
        %622 = vmatprep.subr.mxu0 0.0
        %623 = vmatpush1.xpose.msra.mxu0 0.0
        %624 = vmatprep.subr.mxu0 0.0
        %625 = vmatpush1.xpose.msra.mxu0 0.0
        %626 = vmatprep.subr.mxu0 0.0
        %627 = vmatpush1.xpose.msra.mxu0 0.0
        %628 = vmatprep.subr.mxu0 0.0
        %629 = vmatpush1.xpose.msra.mxu0 0.0
        %630 = vmatprep.subr.mxu0 0.0
        %631 = vmatpush1.xpose.msra.mxu0 0.0
        %632 = vmatprep.subr.mxu0 0.0
        %633 = vmatpush1.xpose.msra.mxu0 0.0
        %634 = vmatprep.subr.mxu0 0.0
        %635 = vmatpush1.xpose.msra.mxu0 0.0
        %636 = vmatprep.subr.mxu0 0.0
        %637 = vmatpush1.xpose.msra.mxu0 0.0
        %638 = vmatprep.subr.mxu0 0.0
        %639 = vmatpush1.xpose.msra.mxu0 0.0
        %640 = vmatprep.mubr.f32.mxu0 0.0
        %641 = vmatmul.mubr.f32.gmra.mrb[0].mxu0 %v557
        %v642 = vpop.f32.mrb[0].mxu0
        %v643 = vadd.f32 0.0, %v642
        %v644 = vpop.f32.mrb[0].mxu0
        %645 = vdwg.mxu0
        %646 = vmax.xlane.f32.xlu0 %v643
        %v647 = vpop.xlane.xlu0 %646
        %v648 = vsub.f32 %v643, %v647
        %v649 = vmul.f32 %v648, 1.442695
        %v650 = vpow.pop %v649
        %651 = vadd.xlane.f32.xlu0 %v650
        %v652 = vpop.xlane.xlu0 %651
        %v653 = vrcp.pop %v652
        %v654 = vmul.f32 %v650, %v653
        %v655 = vld [vmem:[#allocation9] sm:$0xff]
        %v656 = vld [vmem:[#allocation9 + $0x8] sm:$0xff]
        %v657 = vld [vmem:[#allocation9 + $0x10] sm:$0xff]
        %v658 = vld [vmem:[#allocation9 + $0x18] sm:$0xff]
        %v659 = vld [vmem:[#allocation9 + $0x20] sm:$0xff]
        %v660 = vld [vmem:[#allocation9 + $0x28] sm:$0xff]
        %v661 = vld [vmem:[#allocation9 + $0x30] sm:$0xff]
        %v662 = vld [vmem:[#allocation9 + $0x38] sm:$0xff]
        %v663 = vld [vmem:[#allocation9 + $0x40] sm:$0xff]
        %v664 = vld [vmem:[#allocation9 + $0x48] sm:$0xff]
        %v665 = vld [vmem:[#allocation9 + $0x50] sm:$0xff]
        %v666 = vld [vmem:[#allocation9 + $0x58] sm:$0xff]
        %v667 = vld [vmem:[#allocation9 + $0x60] sm:$0xff]
        %v668 = vld [vmem:[#allocation9 + $0x68] sm:$0xff]
        %v669 = vld [vmem:[#allocation9 + $0x70] sm:$0xff]
        %v670 = vld [vmem:[#allocation9 + $0x78] sm:$0xff]
        %671 = vmatprep.subr.mxu0 0.0
        %672 = vmatpush1.msra.mxu0 %v655
        %673 = vmatprep.subr.mxu0 0.0
        %674 = vmatpush1.msra.mxu0 %v656
        %675 = vmatprep.subr.mxu0 0.0
        %676 = vmatpush1.msra.mxu0 %v657
        %677 = vmatprep.subr.mxu0 0.0
        %678 = vmatpush1.msra.mxu0 %v658
        %679 = vmatprep.subr.mxu0 0.0
        %680 = vmatpush1.msra.mxu0 %v659
        %681 = vmatprep.subr.mxu0 0.0
        %682 = vmatpush1.msra.mxu0 %v660
        %683 = vmatprep.subr.mxu0 0.0
        %684 = vmatpush1.msra.mxu0 %v661
        %685 = vmatprep.subr.mxu0 0.0
        %686 = vmatpush1.msra.mxu0 %v662
        %687 = vmatprep.subr.mxu0 0.0
        %688 = vmatpush1.msra.mxu0 %v663
        %689 = vmatprep.subr.mxu0 0.0
        %690 = vmatpush1.msra.mxu0 %v664
        %691 = vmatprep.subr.mxu0 0.0
        %692 = vmatpush1.msra.mxu0 %v665
        %693 = vmatprep.subr.mxu0 0.0
        %694 = vmatpush1.msra.mxu0 %v666
        %695 = vmatprep.subr.mxu0 0.0
        %696 = vmatpush1.msra.mxu0 %v667
        %697 = vmatprep.subr.mxu0 0.0
        %698 = vmatpush1.msra.mxu0 %v668
        %699 = vmatprep.subr.mxu0 0.0
        %700 = vmatpush1.msra.mxu0 %v669
        %701 = vmatprep.subr.mxu0 0.0
        %702 = vmatpush1.msra.mxu0 %v670
        %703 = vmatprep.subr.mxu0 0.0
        %704 = vmatpush1.msra.mxu0 0.0
        %705 = vmatprep.subr.mxu0 0.0
        %706 = vmatpush1.msra.mxu0 0.0
        %707 = vmatprep.subr.mxu0 0.0
        %708 = vmatpush1.msra.mxu0 0.0
        %709 = vmatprep.subr.mxu0 0.0
        %710 = vmatpush1.msra.mxu0 0.0
        %711 = vmatprep.subr.mxu0 0.0
        %712 = vmatpush1.msra.mxu0 0.0
        %713 = vmatprep.subr.mxu0 0.0
        %714 = vmatpush1.msra.mxu0 0.0
        %715 = vmatprep.subr.mxu0 0.0
        %716 = vmatpush1.msra.mxu0 0.0
        %717 = vmatprep.subr.mxu0 0.0
        %718 = vmatpush1.msra.mxu0 0.0
        %719 = vmatprep.subr.mxu0 0.0
        %720 = vmatpush1.msra.mxu0 0.0
        %721 = vmatprep.subr.mxu0 0.0
        %722 = vmatpush1.msra.mxu0 0.0
        %723 = vmatprep.subr.mxu0 0.0
        %724 = vmatpush1.msra.mxu0 0.0
        %725 = vmatprep.subr.mxu0 0.0
        %726 = vmatpush1.msra.mxu0 0.0
        %727 = vmatprep.subr.mxu0 0.0
        %728 = vmatpush1.msra.mxu0 0.0
        %729 = vmatprep.subr.mxu0 0.0
        %730 = vmatpush1.msra.mxu0 0.0
        %731 = vmatprep.subr.mxu0 0.0
        %732 = vmatpush1.msra.mxu0 0.0
        %733 = vmatprep.subr.mxu0 0.0
        %734 = vmatpush1.msra.mxu0 0.0
        %735 = vmatprep.mubr.f32.mxu0 0.0
        %736 = vmatmul.mubr.f32.gmra.mrb[0].mxu0 %v654
        %v737 = vpop.f32.mrb[0].mxu0
        %v738 = vadd.f32 0.0, %v737
        %v739 = vpop.f32.mrb[0].mxu0
        %740 = vdwg.mxu0
        %741 = vst [vmem:[%s273] sm:$0xff] %v738
        %s742 = sand.u32 %s136, 1
        %s743 = scalar_lea.sflag [#allocation5], %s742
        %s744 = sand.u32 %s136, 1
        %s745 = smul.addr %s744, 8
        %s746 = scalar_lea.vmem [#allocation11], %s745
        // Predicated region
        $region57: #{tpu_custom_call.1} parent=35 // pred_check
          %p747 = pneg %p146
        $region58: #{tpu_custom_call.1} parent=35 // pred_check_branch
          %749 = sbr.rel (%p747) target = $region60
        $region59: #{tpu_custom_call.1} parent=35 // pred_region
          %s750 = sadd.s32 %s27, %s28
          %s752 = ssub.s32 128, 128
          %753 = vsyncadd %s743, %s752
          %s754 = smul.addr %s750, 128
          %s755 = scalar_lea.hbm %s4, %s754
          %s757 = sshll.u32 %s746, 4
          %s758 = int_to_ptr.vmem [resolvable:$true] %s757
          %760 = dma.vmem_to_hbm [thread:$0]  %s758, 128, %s755, %s743
        $region60: #{tpu_custom_call.1} parent=35 // pred_fallthru
          _
      $region36: #{tpu_custom_call.1} parent=5 // pred_fallthru
        _
      %p761 = scmp.le.s32.totalorder 2, %s18
      // Predicated region
      $region61: #{tpu_custom_call.1} parent=5 // pred_check
        %p762 = pneg %p761
      $region62: #{tpu_custom_call.1} parent=5 // pred_check_branch
        %764 = sbr.rel (%p762) target = $region64
      $region63: #{tpu_custom_call.1} parent=5 // pred_region
        %s765 = ssub.s32 %s18, 2
        // Predicated region
        $region65: #{tpu_custom_call.1} parent=63 // pred_check
          %p766 = pneg %p152
        $region66: #{tpu_custom_call.1} parent=63 // pred_check_branch
          %768 = sbr.rel (%p766) target = $region68
        $region67: #{tpu_custom_call.1} parent=63 // pred_region
          %s769 = sand.u32 %s137, 1
          %s770 = scalar_lea.sflag [#allocation5], %s769
          %s771 = sand.u32 %s137, 1
          %s772 = smul.addr %s771, 8
          %s773 = scalar_lea.vmem [#allocation11], %s772
          %774 = dma.done %s770, 128
        $region68: #{tpu_custom_call.1} parent=63 // pred_fallthru
          _
      $region64: #{tpu_custom_call.1} parent=5 // pred_fallthru
        _
    $region6: #{tpu_custom_call.1} parent=1 // loop_footer
      %s22 = sadd.s32 1, %s18
    $region7: #{tpu_custom_call.1} parent=1 // loop_footer_branch
      %17 = sbr.rel target = $region3
    $region8: #{tpu_custom_call.1} parent=1 // loop_exit
      _
    %775 = vsyncpa [#allocation4], 1
    %s776 = scalar_lea.sflag [#allocation4], 1
    %777 = vsyncpa %s776, 1
    %778 = vsyncpa [#allocation7], 1
    %779 = vsyncpa [#allocation10], 1
    %780 = vsyncpa [#allocation5], 1
    %s781 = scalar_lea.sflag [#allocation5], 1
    %782 = vsyncpa %s781, 1

</llo_original>
